<compile_context>
chip_gen: v5e
topology: v5e:2x2
jax: 0.10.0
libtpu: 0.0.40
codegen_flags: <defaults>
</compile_context>

<pallas_src>
import jax
import jax.numpy as jnp
from jax.experimental import pallas as pl
from jax.experimental.pallas import tpu as pltpu

ESP = 1e-08
LANE = 128
SUBLANE = 8


def _elem_loss_f32(p, g):
    # 1 - sqrt(p*g + eps) - sqrt((1-p)*(1-g) + eps), with (1-p)(1-g) expanded so the
    # p*g product is reused: 1 mul + a handful of adds/subs + 2 EUP sqrts per element.
    t = p * g
    return 1.0 - jnp.sqrt(t + ESP) - jnp.sqrt((1.0 + ESP) - p - g + t)


def _mf_loss_kernel(p_ref, g_ref, out_ref):
    j = pl.program_id(1)  # reduction axis within a shard

    @pl.when(j == 0)
    def _():
        out_ref[...] = jnp.zeros_like(out_ref)

    p = p_ref[...].astype(jnp.float32)
    g = g_ref[...].astype(jnp.float32)
    loss = _elem_loss_f32(p, g)

    # Per-(sublane, lane) partial sums: the reshape matches the (8,128) vreg tiling,
    # so this is rows//8 pure VPU vreg adds straight into the resident output block.
    rows = loss.shape[0]
    out_ref[...] += loss.reshape(rows // SUBLANE, SUBLANE, LANE).sum(axis=0)


def multi_fidelity_loss(p, g, *, block_rows=4096, num_shards=1):
    """Pallas implementation of Multi_Fidelity_Loss.forward(p, g) -> scalar."""
    assert p.shape == g.shape
    total = int(p.size)
    assert total > 0

    # Dtype-aware minimum sublane rows (packed-tile minimums: (8|16|32, 128)).
    def _min_rows(dt):
        return {4: 8, 2: 16, 1: 32}.get(jnp.dtype(dt).itemsize, 8)

    min_rows = max(_min_rows(p.dtype), _min_rows(g.dtype))

    # Lane-dense flatten; native dtype is kept (cast to f32 happens in-kernel).
    # TODO(synk): verify in xprof that this flatten/reshape does not materialize an
    # extra HBM relayout copy for exotic producer layouts; if it does, flatten at the
    # producer instead.
    p_flat = jnp.ravel(p)
    g_flat = jnp.ravel(g)

    lane_rows = total // LANE
    br = int(min(block_rows, max(min_rows, (lane_rows // min_rows) * min_rows)))
    block_elems = br * LANE

    pad_corr = jnp.float32(0.0)
    tail_sum = jnp.float32(0.0)

    if total < block_elems:
        # Tiny input (< one minimal block): pad (a few-KiB copy) up to exactly one
        # block with 0.5 (its per-element contribution is ~ -2e-8) and remove that
        # contribution analytically.  No in-kernel masking anywhere.
        pad = block_elems - total
        p_main = jnp.pad(p_flat, (0, pad), constant_values=0.5).reshape(br, LANE)
        g_main = jnp.pad(g_flat, (0, pad), constant_values=0.5).reshape(br, LANE)
        pv = jnp.asarray(0.5, p.dtype).astype(jnp.float32)
        gv = jnp.asarray(0.5, g.dtype).astype(jnp.float32)
        pad_corr = -jnp.float32(pad) * _elem_loss_f32(pv, gv)
        num_shards_eff, blocks_per_shard = 1, 1
    else:
        nblocks = total // block_elems
        num_shards_eff = max(1, min(int(num_shards), nblocks))
        blocks_per_shard = nblocks // num_shards_eff
        main_elems = num_shards_eff * blocks_per_shard * block_elems
        p_main = p_flat[:main_elems].reshape(-1, LANE)
        g_main = g_flat[:main_elems].reshape(-1, LANE)
        if main_elems < total:
            # Ragged remainder (< num_shards * one block): tiny plain-JAX epilogue.
            # Avoids a full read+write jnp.pad of both inputs for non-divisible sizes.
            pt = p_flat[main_elems:].astype(jnp.float32)
            gt = g_flat[main_elems:].astype(jnp.float32)
            tail_sum = jnp.sum(_elem_loss_f32(pt, gt))

    def in_map(s, j):
        return (s * blocks_per_shard + j, 0)

    partials = pl.pallas_call(
        _mf_loss_kernel,
        out_shape=jax.ShapeDtypeStruct((num_shards_eff * SUBLANE, LANE), jnp.float32),
        grid_spec=pltpu.PrefetchScalarGridSpec(
            num_scalar_prefetch=0,
            grid=(num_shards_eff, blocks_per_shard),
            in_specs=[
                pl.BlockSpec((br, LANE), in_map),
                pl.BlockSpec((br, LANE), in_map),
            ],
            # Lane-dense (8,128) accumulator output per shard; single cross-lane
            # reduce happens in plain JAX below.
            out_specs=pl.BlockSpec((SUBLANE, LANE), lambda s, j: (s, 0)),
        ),
        compiler_params=pltpu.CompilerParams(
            # TODO(synk): on v7x, use pltpu.CORE_PARALLEL on the shard axis (with
            # num_shards=2) for a real 2-TensorCore split; plain "parallel" is kept
            # here for portability across v5e/v6e/v7x single-TC defaults.
            dimension_semantics=("parallel", "arbitrary"),
        ),
    )(p_main, g_main)

    # Divide by the TRUE element count.
    return (jnp.sum(partials) + tail_sum + pad_corr) / jnp.float32(total)


def _reference(p, g):
    # Pure-JAX mirror of the PyTorch per-column loop (for verification).
    C = p.shape[1]
    loss = 0.0
    for i in range(C):
        p_i = p[:, i].reshape(-1, 1).astype(jnp.float32)
        g_i = g[:, i].reshape(-1, 1).astype(jnp.float32)
        loss_i = 1.0 - (jnp.sqrt(p_i * g_i + ESP) + jnp.sqrt((1.0 - p_i) * (1.0 - g_i) + ESP))
        loss = loss + loss_i
    loss = loss / C
    return jnp.mean(loss)


if __name__ == "__main__":
    key = jax.random.PRNGKey(0)

    # Test 1: small, "nice" shape (batch=16, 4 fidelity columns) -> tiny-pad path.
    kp, kg, key = jax.random.split(key, 3)
    p = jax.random.uniform(kp, (16, 4), dtype=jnp.float32)
    g = jax.random.uniform(kg, (16, 4), dtype=jnp.float32)
    out = jax.block_until_ready(multi_fidelity_loss(p, g))
    ref = _reference(p, g)
    assert jnp.allclose(out, ref, atol=1e-5, rtol=1e-5), (out, ref)

    # Test 2: ragged small shape (13 x 5) -> tiny-pad path, non-multiple of 128.
    kp, kg, key = jax.random.split(key, 3)
    p2 = jax.random.uniform(kp, (13, 5), dtype=jnp.float32)
    g2 = jax.random.uniform(kg, (13, 5), dtype=jnp.float32)
    out2 = jax.block_until_ready(multi_fidelity_loss(p2, g2))
    ref2 = _reference(p2, g2)
    assert jnp.allclose(out2, ref2, atol=1e-5, rtol=1e-5), (out2, ref2)

    # Test 3: larger ragged shape (257 x 33) -> kernel main path + plain-JAX tail epilogue.
    kp, kg, key = jax.random.split(key, 3)
    p3 = jax.random.uniform(kp, (257, 33), dtype=jnp.float32)
    g3 = jax.random.uniform(kg, (257, 33), dtype=jnp.float32)
    out3 = jax.block_until_ready(multi_fidelity_loss(p3, g3))
    ref3 = _reference(p3, g3)
    assert jnp.allclose(out3, ref3, atol=1e-5, rtol=1e-5), (out3, ref3)

    print("KERNEL_OK")
</pallas_src>

<mosaic_0001>
module attributes {stable_mosaic.version = 11 : i64} {
  func.func @_mf_loss_kernel(%arg0: i32, %arg1: i32, %arg2: memref<8x128xf32, #tpu.memory_space<vmem>>, %arg3: memref<8x128xf32, #tpu.memory_space<vmem>>, %arg4: memref<8x128xf32, #tpu.memory_space<vmem>>) attributes {dimension_semantics = [#tpu.dimension_semantics<parallel>, #tpu.dimension_semantics<arbitrary>], iteration_bounds = array<i64: 1, 1>, scalar_prefetch = 0 : i64, scratch_operands = 0 : i64, tpu.core_type = #tpu.core_type<tc>, window_params = [{transform_indices = @transform_0, window_bounds = array<i64: 8, 128>}, {transform_indices = @transform_1, window_bounds = array<i64: 8, 128>}, {transform_indices = @transform_2, window_bounds = array<i64: 8, 128>}]} {
    %c0_i32 = arith.constant 0 : i32
    %0 = arith.cmpi eq, %arg1, %c0_i32 : i32
    %1 = arith.extui %0 : i1 to i32
    %c0_i32_0 = arith.constant 0 : i32
    %2 = arith.cmpi ne, %1, %c0_i32_0 : i32
    scf.if %2 {
      %cst_11 = arith.constant 0.000000e+00 : f32
      %22 = vector.broadcast %cst_11 : f32 to vector<8x128xf32>
      %c0_12 = arith.constant 0 : index
      %c0_13 = arith.constant 0 : index
      %23 = vector.load %arg4[%c0_12, %c0_13] : memref<8x128xf32, #tpu.memory_space<vmem>>, vector<8x128xf32>
      tpu.vector_store %arg4[%c0_12, %c0_13], %22 {strides = array<i32>} : memref<8x128xf32, #tpu.memory_space<vmem>>, vector<8x128xf32>,
    } else {
    }
    %c0 = arith.constant 0 : index
    %c0_1 = arith.constant 0 : index
    %3 = vector.load %arg2[%c0, %c0_1] : memref<8x128xf32, #tpu.memory_space<vmem>>, vector<8x128xf32>
    %c0_2 = arith.constant 0 : index
    %c0_3 = arith.constant 0 : index
    %4 = vector.load %arg3[%c0_2, %c0_3] : memref<8x128xf32, #tpu.memory_space<vmem>>, vector<8x128xf32>
    %5 = arith.mulf %3, %4 : vector<8x128xf32>
    %cst = arith.constant 9.99999993E-9 : f32
    %6 = vector.broadcast %cst : f32 to vector<8x128xf32>
    %7 = arith.addf %5, %6 : vector<8x128xf32>
    %8 = math.sqrt %7 : vector<8x128xf32>
    %cst_4 = arith.constant 1.000000e+00 : f32
    %9 = vector.broadcast %cst_4 : f32 to vector<8x128xf32>
    %10 = arith.subf %9, %8 : vector<8x128xf32>
    %cst_5 = arith.constant 1.000000e+00 : f32
    %11 = vector.broadcast %cst_5 : f32 to vector<8x128xf32>
    %12 = arith.subf %11, %3 : vector<8x128xf32>
    %13 = arith.subf %12, %4 : vector<8x128xf32>
    %14 = arith.addf %13, %5 : vector<8x128xf32>
    %15 = math.sqrt %14 : vector<8x128xf32>
    %16 = arith.subf %10, %15 : vector<8x128xf32>
    %c0_6 = arith.constant 0 : index
    %c0_7 = arith.constant 0 : index
    %17 = vector.load %arg4[%c0_6, %c0_7] : memref<8x128xf32, #tpu.memory_space<vmem>>, vector<8x128xf32>
    %18 = vector.shape_cast %16 : vector<8x128xf32> to vector<1x8x128xf32>
    %cst_8 = arith.constant dense<0.000000e+00> : vector<8x128xf32>
    %19 = vector.multi_reduction <add>, %18, %cst_8 [0] : vector<1x8x128xf32> to vector<8x128xf32>
    %20 = arith.addf %17, %19 : vector<8x128xf32>
    %c0_9 = arith.constant 0 : index
    %c0_10 = arith.constant 0 : index
    %21 = vector.load %arg4[%c0_9, %c0_10] : memref<8x128xf32, #tpu.memory_space<vmem>>, vector<8x128xf32>
    tpu.vector_store %arg4[%c0_9, %c0_10], %20 {strides = array<i32>} : memref<8x128xf32, #tpu.memory_space<vmem>>, vector<8x128xf32>,
    return
  }
  func.func @transform_0(%arg0: i32, %arg1: i32) -> (i32, i32) {
    %c1_i32 = arith.constant 1 : i32
    %0 = arith.muli %arg0, %c1_i32 : i32
    %1 = arith.addi %0, %arg1 : i32
    %c0_i32 = arith.constant 0 : i32
    %c0_i32_0 = arith.constant 0 : i32
    return %1, %c0_i32 : i32, i32
  }
  func.func @transform_1(%arg0: i32, %arg1: i32) -> (i32, i32) {
    %c1_i32 = arith.constant 1 : i32
    %0 = arith.muli %arg0, %c1_i32 : i32
    %1 = arith.addi %0, %arg1 : i32
    %c0_i32 = arith.constant 0 : i32
    %c0_i32_0 = arith.constant 0 : i32
    return %1, %c0_i32 : i32, i32
  }
  func.func @transform_2(%arg0: i32, %arg1: i32) -> (i32, i32) {
    %c0_i32 = arith.constant 0 : i32
    %c0_i32_0 = arith.constant 0 : i32
    return %arg0, %c0_i32 : i32, i32
  }
}

</mosaic_0001>

<llo_original>
// kernel: tpu_custom_call.1
$region0: #{tpu_custom_call.1}
  #allocation0 [shape = 'u32[]', space=smem, size = 0x4, offset = 0x4, fixed_abs, tag = 'smem constant byte address 0x4 - core index']
  #allocation1 [shape = 'u32[72,128]{1,0:T(1,128)}', space=vmem, size = 0x9000, scoped, tag = 'internal scratch']
  %s0 = inlined_call_operand.hbm [shape: f32[8,128], index: 0, kind: input, shape index: {}]
  %s1 = inlined_call_operand.hbm [shape: f32[8,128], index: 1, kind: input, shape index: {}]
  %s2 = inlined_call_operand.hbm [shape: f32[8,128], index: 2, kind: output, shape index: {}]
  %s3 = sld [smem:[#allocation0]]
  $region30: #{tpu_custom_call.1} parent=0
    _
  %s5 = ssub.s32 1, %s3
  %s6 = scalar_select 0, %s5, %s3
  $region1: #{tpu_custom_call.1} parent=0
    #allocation2 [shape = 'u8[4096]{0}', space=vmem, size = 0x1000, scoped, tag = 'input window, operand 0, single buffered']
    #allocation3 [shape = 's32[1]{0}', space=sflag, size = 0x4, scoped, tag = 'scoped memory for tpu_custom_call.1']
    #allocation4 [shape = 's32[1]{0}', space=sflag, size = 0x4, scoped, tag = 'scoped memory for tpu_custom_call.1']
    #allocation5 [shape = 'u8[4096]{0}', space=vmem, size = 0x1000, scoped, tag = 'input window, operand 1, single buffered']
    #allocation6 [shape = 's32[1]{0}', space=sflag, size = 0x4, scoped, tag = 'scoped memory for tpu_custom_call.1']
    #allocation7 [shape = 'u8[4096]{0}', space=vmem, size = 0x1000, scoped, tag = 'output window, operand 0, single buffered']
    %7 = vsyncpa [#allocation3], 0
    %8 = vsyncpa [#allocation6], 0
    %9 = vsyncpa [#allocation4], 0
    // Predicated region
    $region2: #{tpu_custom_call.1} parent=1 // pred_check
      _
    $region3: #{tpu_custom_call.1} parent=1 // pred_check_branch
      %11 = sbr.rel (0) target = $region5
    $region4: #{tpu_custom_call.1} parent=1 // pred_region
      %s12 = sadd.s32 0, 0
      %14 = vsyncadd [#allocation3], 0
      %s15 = smul.addr %s12, 8
      %s16 = scalar_lea.hbm %s0, %s15
      %s18 = sshll.u32 %s16, 4
      %s19 = int_to_ptr.hbm [resolvable:$true] %s18
      %s20 = sshll.u32 [#allocation2], 4
      %s21 = int_to_ptr.vmem [resolvable:$true] %s20
      %23 = dma.hbm_to_vmem [thread:$0]  %s19, 128, %s21, [#allocation3]
    $region5: #{tpu_custom_call.1} parent=1 // pred_fallthru
      _
    // Predicated region
    $region6: #{tpu_custom_call.1} parent=1 // pred_check
      _
    $region7: #{tpu_custom_call.1} parent=1 // pred_check_branch
      %25 = sbr.rel (0) target = $region9
    $region8: #{tpu_custom_call.1} parent=1 // pred_region
      %s26 = sadd.s32 0, 0
      %28 = vsyncadd [#allocation6], 0
      %s29 = smul.addr %s26, 8
      %s30 = scalar_lea.hbm %s1, %s29
      %s32 = sshll.u32 %s30, 4
      %s33 = int_to_ptr.hbm [resolvable:$true] %s32
      %s34 = sshll.u32 [#allocation5], 4
      %s35 = int_to_ptr.vmem [resolvable:$true] %s34
      %37 = dma.hbm_to_vmem [thread:$0]  %s33, 128, %s35, [#allocation6]
    $region9: #{tpu_custom_call.1} parent=1 // pred_fallthru
      _
    // Predicated region
    $region10: #{tpu_custom_call.1} parent=1 // pred_check
      _
    $region11: #{tpu_custom_call.1} parent=1 // pred_check_branch
      %39 = sbr.rel (0) target = $region13
    $region12: #{tpu_custom_call.1} parent=1 // pred_region
      %41 = dma.done [#allocation3], 128
    $region13: #{tpu_custom_call.1} parent=1 // pred_fallthru
      _
    // Predicated region
    $region14: #{tpu_custom_call.1} parent=1 // pred_check
      _
    $region15: #{tpu_custom_call.1} parent=1 // pred_check_branch
      %43 = sbr.rel (0) target = $region17
    $region16: #{tpu_custom_call.1} parent=1 // pred_region
      %45 = dma.done [#allocation6], 128
    $region17: #{tpu_custom_call.1} parent=1 // pred_fallthru
      _
    %s46 = sadd.s32 0, 0
    %s47 = sadd.s32 0, 0
    %p48 = scmp.eq.s32.totalorder 0, 0
    // Predicated region
    $region18: #{tpu_custom_call.1} parent=1 // pred_check
      %p49 = pneg %p48
    $region19: #{tpu_custom_call.1} parent=1 // pred_check_branch
      %51 = sbr.rel (%p49) target = $region21
    $region20: #{tpu_custom_call.1} parent=1 // pred_region
      %52 = vst [vmem:[#allocation7] sm:$0xff] 0.0
    $region21: #{tpu_custom_call.1} parent=1 // pred_fallthru
      _
    %v53 = vld [vmem:[#allocation2] sm:$0xff]
    %v54 = vld [vmem:[#allocation5] sm:$0xff]
    %v55 = vmul.f32 %v53, %v54
    %v56 = vadd.f32 %v55, 1e-08
    %v57 = vrsqrt.pop %v56
    %v58 = vmul.f32 %v57, %v56
    %v59 = vmul.f32 %v58, %v57
    %v60 = vmul.f32 0.5, %v59
    %v61 = vsub.f32 1.5, %v60
    %v62 = vmul.f32 %v57, %v61
    %v63 = vmul.f32 %v56, %v62
    %vm64 = vcmp.eq.f32.partialorder %v56, inf
    %v65 = vsel %vm64, %v56, %v63
    %vm66 = vcmp.eq.f32.partialorder %v56, 0.0
    %v67 = vand.u32 %v56, 2147483648
    %v68 = vsel %vm66, %v67, %v65
    %v69 = vsub.f32 1.0, %v68
    %v70 = vsub.f32 1.0, %v53
    %v71 = vsub.f32 %v70, %v54
    %v72 = vadd.f32 %v71, %v55
    %v73 = vrsqrt.pop %v72
    %v74 = vmul.f32 %v73, %v72
    %v75 = vmul.f32 %v74, %v73
    %v76 = vmul.f32 0.5, %v75
    %v77 = vsub.f32 1.5, %v76
    %v78 = vmul.f32 %v73, %v77
    %v79 = vmul.f32 %v72, %v78
    %vm80 = vcmp.eq.f32.partialorder %v72, inf
    %v81 = vsel %vm80, %v72, %v79
    %vm82 = vcmp.eq.f32.partialorder %v72, 0.0
    %v83 = vand.u32 %v72, 2147483648
    %v84 = vsel %vm82, %v83, %v81
    %v85 = vsub.f32 %v69, %v84
    %v86 = vld [vmem:[#allocation7] sm:$0xff]
    %v87 = vadd.f32 %v85, 0.0
    %v88 = vadd.f32 %v86, %v87
    %89 = vst [vmem:[#allocation7] sm:$0xff] %v88
    // Predicated region
    $region22: #{tpu_custom_call.1} parent=1 // pred_check
      _
    $region23: #{tpu_custom_call.1} parent=1 // pred_check_branch
      %91 = sbr.rel (0) target = $region25
    $region24: #{tpu_custom_call.1} parent=1 // pred_region
      %93 = vsyncadd [#allocation4], 0
      %s95 = sshll.u32 [#allocation7], 4
      %s96 = int_to_ptr.vmem [resolvable:$true] %s95
      %s97 = sshll.u32 %s2, 4
      %s98 = int_to_ptr.hbm [resolvable:$true] %s97
      %100 = dma.vmem_to_hbm [thread:$0]  %s96, 128, %s98, [#allocation4]
    $region25: #{tpu_custom_call.1} parent=1 // pred_fallthru
      _
    // Predicated region
    $region26: #{tpu_custom_call.1} parent=1 // pred_check
      _
    $region27: #{tpu_custom_call.1} parent=1 // pred_check_branch
      %102 = sbr.rel (0) target = $region29
    $region28: #{tpu_custom_call.1} parent=1 // pred_region
      %104 = dma.done [#allocation4], 128
    $region29: #{tpu_custom_call.1} parent=1 // pred_fallthru
      _
    %105 = vsyncpa [#allocation3], 1
    %106 = vsyncpa [#allocation6], 1
    %107 = vsyncpa [#allocation4], 1

</llo_original>
